<compile_context>
chip_gen: v7x
topology: tpu7x:2x2x1
jax: 0.10.0
libtpu: 0.0.40
codegen_flags: <defaults>
</compile_context>

<pallas_src>
import jax
import jax.numpy as jnp
from jax.experimental import pallas as pl
from jax.experimental.pallas import tpu as pltpu

EPS = 1e-5


# --------------------------------------------------------------------------- kernels
def add_norm_kernel(x_ref, y_ref, gamma_ref, beta_ref, o_ref):
    # x_ref, y_ref, o_ref: (tile_rows, D); gamma_ref, beta_ref: (1, D) in f32.
    s = (x_ref[...] + y_ref[...]).astype(jnp.float32)
    mean = jnp.mean(s, axis=-1, keepdims=True)
    ex2 = jnp.mean(s * s, axis=-1, keepdims=True)
    var = jnp.maximum(ex2 - mean * mean, 0.0)
    inv = jax.lax.rsqrt(var + EPS)
    # Fused form: (s - mean) * (inv * gamma) + beta.
    o_ref[...] = ((s - mean) * (inv * gamma_ref[...]) + beta_ref[...]).astype(o_ref.dtype)


def add_norm_packed_kernel(x_ref, y_ref, gamma_ref, beta_ref, gmat_ref, o_ref):
    # Packed layout: each physical row holds `pack` logical rows side by side in the
    # 128 lanes.  gmat is a (128, 128) block-diagonal averaging matrix (1/d_model
    # within a lane group, 0 elsewhere), so s @ gmat yields each group's mean
    # broadcast back over that group's lanes.  MXU is otherwise idle; HIGHEST
    # precision keeps the f32 reduction accurate.
    s = (x_ref[...] + y_ref[...]).astype(jnp.float32)
    g = gmat_ref[...]
    mean = jnp.dot(s, g, precision=jax.lax.Precision.HIGHEST,
                   preferred_element_type=jnp.float32)
    ex2 = jnp.dot(s * s, g, precision=jax.lax.Precision.HIGHEST,
                  preferred_element_type=jnp.float32)
    var = jnp.maximum(ex2 - mean * mean, 0.0)
    inv = jax.lax.rsqrt(var + EPS)
    o_ref[...] = ((s - mean) * (inv * gamma_ref[...]) + beta_ref[...]).astype(o_ref.dtype)


# --------------------------------------------------------------------------- sizing
def _vmem_capacity_bytes():
    """Physical VMEM of the local chip; conservative 64 MiB (v7x-class) fallback."""
    try:
        cap = getattr(pltpu.get_tpu_info(), "vmem_capacity_bytes", None)
        if cap:
            return int(cap)
    except Exception:
        pass
    return 64 << 20


def _num_tensorcores():
    """Best-effort TensorCores per device.  Only megacore chips benefit from >1."""
    try:
        kind = jax.devices()[0].device_kind.lower()
    except Exception:
        return 1
    if "v4" in kind or "v5p" in kind or "v7" in kind or "7x" in kind:
        return 2
    return 1


def _pick_tile_rows(rows, d_block, itemsize):
    """Largest dtype-aligned row tile that fits the generation-aware VMEM budget.

    Per-element VMEM cost: 2 inputs + 1 output double-buffered (6*itemsize) plus
    ~2 tile-sized f32 intermediates the reductions force to materialize (2*4 B).
    Budget ~72% of physical VMEM (~46 MiB on v7x's 64 MiB, ~92 MiB on v5e/v6e's
    128 MiB) to leave headroom for compiler-internal scratch.
    """
    budget = int(_vmem_capacity_bytes() * 0.72)
    bytes_per_row = d_block * (6 * itemsize + 2 * 4)
    max_by_vmem = max(1, budget // bytes_per_row)

    sublane = max(8, 32 // itemsize)           # 8 f32, 16 bf16, 32 int8/fp8
    tile = min(4096, max_by_vmem, rows)        # >=4096 rows: ~0.35us/step is <1%

    n_cores = _num_tensorcores()
    if n_cores > 1 and rows >= 2 * n_cores * sublane:
        # Megacore: keep >= 2*n_cores grid steps so both TCs get work.
        tile = min(tile, rows // (2 * n_cores))

    if tile >= sublane:
        tile = (tile // sublane) * sublane     # sublane-packed stores
    tile = max(1, min(tile, rows))

    # Megacore: nudge toward an even step count so the 2 TCs split evenly.
    if n_cores > 1 and sublane < tile < rows:
        steps = -(-rows // tile)
        if steps % 2:
            for cand in range(tile - sublane, max(sublane, tile // 2) - 1, -sublane):
                if (-(-rows // cand)) % 2 == 0:
                    tile = cand
                    break
    return tile


# --------------------------------------------------------------------------- wrapper
def add_norm(x, sublayer_outputs, gamma, beta, *, tile_rows=None):
    assert x.shape == sublayer_outputs.shape
    orig_shape = x.shape
    d_model = orig_shape[-1]
    itemsize = jnp.dtype(x.dtype).itemsize

    x2 = x.reshape(-1, d_model)
    y2 = sublayer_outputs.reshape(-1, d_model)
    rows = x2.shape[0]

    # Lane-dense repack for small d_model that divides 128.
    pack = 128 // d_model if (d_model < 128 and 128 % d_model == 0) else 1

    if pack > 1:
        pad_rows = (-rows) % pack
        if pad_rows:
            x2 = jnp.pad(x2, ((0, pad_rows), (0, 0)))
            y2 = jnp.pad(y2, ((0, pad_rows), (0, 0)))
        rows_p = (rows + pad_rows) // pack
        d_block = pack * d_model               # == 128
        x2 = x2.reshape(rows_p, d_block)
        y2 = y2.reshape(rows_p, d_block)
        gamma_row = jnp.tile(gamma.astype(jnp.float32).reshape(1, d_model), (1, pack))
        beta_row = jnp.tile(beta.astype(jnp.float32).reshape(1, d_model), (1, pack))
        lane = jnp.arange(d_block)
        gmat = jnp.where((lane[:, None] // d_model) == (lane[None, :] // d_model),
                         jnp.float32(1.0 / d_model), jnp.float32(0.0))
        kernel = add_norm_packed_kernel
        extra_ins = [gmat]
        extra_specs = [pl.BlockSpec((d_block, d_block), lambda i: (0, 0))]
    else:
        # d_model >= 128 and not a multiple of 128 falls back to masked stores.
        rows_p = rows
        d_block = d_model
        gamma_row = gamma.astype(jnp.float32).reshape(1, d_model)
        beta_row = beta.astype(jnp.float32).reshape(1, d_model)
        kernel = add_norm_kernel
        extra_ins = []
        extra_specs = []

    if tile_rows is None:
        tile_rows = _pick_tile_rows(rows_p, d_block, itemsize)
    tile_rows = max(1, min(tile_rows, rows_p))

    # cdiv grid; Pallas handles the partial last tile (OOB writes dropped).
    grid = (pl.cdiv(rows_p, tile_rows),)

    # Scoped-VMEM limit sized to the true working set (double-buffered tiles plus
    # f32 intermediates plus params), capped to the generation-aware budget.
    params_bytes = 4 * d_block * 4
    if pack > 1:
        params_bytes += 2 * d_block * d_block * 4
    working_set = tile_rows * d_block * (6 * itemsize + 2 * 4) + params_bytes
    vmem_cap = max(int(_vmem_capacity_bytes() * 0.72), 32 << 20)
    vmem_limit = int(max(32 << 20, min(int(working_set * 1.25) + (4 << 20), vmem_cap)))

    out = pl.pallas_call(
        kernel,
        out_shape=jax.ShapeDtypeStruct((rows_p, d_block), x.dtype),
        grid_spec=pltpu.PrefetchScalarGridSpec(
            num_scalar_prefetch=0,
            grid=grid,
            in_specs=[
                pl.BlockSpec((tile_rows, d_block), lambda i: (i, 0)),
                pl.BlockSpec((tile_rows, d_block), lambda i: (i, 0)),
                pl.BlockSpec((1, d_block), lambda i: (0, 0)),
                pl.BlockSpec((1, d_block), lambda i: (0, 0)),
            ] + extra_specs,
            out_specs=pl.BlockSpec((tile_rows, d_block), lambda i: (i, 0)),
        ),
        compiler_params=pltpu.CompilerParams(
            dimension_semantics=("parallel",),
            vmem_limit_bytes=vmem_limit,
        ),
    )(x2, y2, gamma_row, beta_row, *extra_ins)

    if pack > 1:
        out = out.reshape(rows_p * pack, d_model)
        if rows_p * pack != rows:
            out = out[:rows]
    return out.reshape(orig_shape)


# --------------------------------------------------------------------------- demo
if __name__ == "__main__":
    key = jax.random.PRNGKey(0)

    def reference(x, y, g, b):
        s = x + y
        mean = jnp.mean(s, axis=-1, keepdims=True)
        var = jnp.mean((s - mean) ** 2, axis=-1, keepdims=True)
        return (s - mean) * jax.lax.rsqrt(var + EPS) * g + b

    # Small shape consistent with the module; d_model=32 exercises the lane-dense
    # packed path (pack=4).
    batch, seq, d_model = 2, 8, 32
    k1, k2, k3, k4 = jax.random.split(key, 4)
    x = jax.random.normal(k1, (batch, seq, d_model), dtype=jnp.float32)
    sub = jax.random.normal(k2, (batch, seq, d_model), dtype=jnp.float32)
    gamma = 1.0 + 0.1 * jax.random.normal(k3, (d_model,), dtype=jnp.float32)
    beta = 0.1 * jax.random.normal(k4, (d_model,), dtype=jnp.float32)

    out = add_norm(x, sub, gamma, beta)
    jax.block_until_ready(out)
    ref = reference(x, sub, gamma, beta)
    assert out.shape == x.shape
    assert jnp.allclose(out, ref, atol=1e-4, rtol=1e-4), "packed-path mismatch vs reference"

    # d_model=128 exercises the plain lane-dense row path.
    d_model2 = 128
    k5, k6, k7, k8 = jax.random.split(k1, 4)
    x2 = jax.random.normal(k5, (batch, seq, d_model2), dtype=jnp.float32)
    sub2 = jax.random.normal(k6, (batch, seq, d_model2), dtype=jnp.float32)
    gamma2 = 1.0 + 0.1 * jax.random.normal(k7, (d_model2,), dtype=jnp.float32)
    beta2 = 0.1 * jax.random.normal(k8, (d_model2,), dtype=jnp.float32)

    out2 = add_norm(x2, sub2, gamma2, beta2)
    jax.block_until_ready(out2)
    ref2 = reference(x2, sub2, gamma2, beta2)
    assert jnp.allclose(out2, ref2, atol=1e-4, rtol=1e-4), "row-path mismatch vs reference"

    print("KERNEL_OK")
</pallas_src>

<mosaic_0001>
module attributes {stable_mosaic.version = 11 : i64} {
  func.func @add_norm_packed_kernel(%arg0: i32, %arg1: memref<4x128xf32, #tpu.memory_space<vmem>>, %arg2: memref<4x128xf32, #tpu.memory_space<vmem>>, %arg3: memref<1x128xf32, #tpu.memory_space<vmem>>, %arg4: memref<1x128xf32, #tpu.memory_space<vmem>>, %arg5: memref<128x128xf32, #tpu.memory_space<vmem>>, %arg6: memref<4x128xf32, #tpu.memory_space<vmem>>) attributes {dimension_semantics = [#tpu.dimension_semantics<parallel>], iteration_bounds = array<i64: 1>, scalar_prefetch = 0 : i64, scratch_operands = 0 : i64, tpu.core_type = #tpu.core_type<tc>, window_params = [{transform_indices = @transform_0, window_bounds = array<i64: 4, 128>}, {transform_indices = @transform_1, window_bounds = array<i64: 4, 128>}, {pipeline_mode = #tpu.pipeline_mode<synchronous>, transform_indices = @transform_2, window_bounds = array<i64: 1, 128>}, {pipeline_mode = #tpu.pipeline_mode<synchronous>, transform_indices = @transform_3, window_bounds = array<i64: 1, 128>}, {pipeline_mode = #tpu.pipeline_mode<synchronous>, transform_indices = @transform_4, window_bounds = array<i64: 128, 128>}, {transform_indices = @transform_5, window_bounds = array<i64: 4, 128>}]} {
    %c0 = arith.constant 0 : index
    %c0_0 = arith.constant 0 : index
    %0 = vector.load %arg1[%c0, %c0_0] : memref<4x128xf32, #tpu.memory_space<vmem>>, vector<4x128xf32>
    %c0_1 = arith.constant 0 : index
    %c0_2 = arith.constant 0 : index
    %1 = vector.load %arg2[%c0_1, %c0_2] : memref<4x128xf32, #tpu.memory_space<vmem>>, vector<4x128xf32>
    %2 = arith.addf %0, %1 : vector<4x128xf32>
    %c0_3 = arith.constant 0 : index
    %c0_4 = arith.constant 0 : index
    %3 = vector.load %arg5[%c0_3, %c0_4] : memref<128x128xf32, #tpu.memory_space<vmem>>, vector<128x128xf32>
    %cst = arith.constant dense<0.000000e+00> : vector<4x128xf32>
    %4 = tpu.matmul %2, %3, %cst {dimension_numbers = #tpu.dot_dimension_numbers<[1], [0], [0], [1], [0, 0, 1, 1], [], []>, precision = #tpu.contract_precision<fp32>} : vector<4x128xf32>, vector<128x128xf32>, vector<4x128xf32> -> vector<4x128xf32>
    %5 = arith.mulf %2, %2 : vector<4x128xf32>
    %cst_5 = arith.constant dense<0.000000e+00> : vector<4x128xf32>
    %6 = tpu.matmul %5, %3, %cst_5 {dimension_numbers = #tpu.dot_dimension_numbers<[1], [0], [0], [1], [0, 0, 1, 1], [], []>, precision = #tpu.contract_precision<fp32>} : vector<4x128xf32>, vector<128x128xf32>, vector<4x128xf32> -> vector<4x128xf32>
    %7 = arith.mulf %4, %4 : vector<4x128xf32>
    %8 = arith.subf %6, %7 : vector<4x128xf32>
    %cst_6 = arith.constant 0.000000e+00 : f32
    %9 = vector.broadcast %cst_6 : f32 to vector<4x128xf32>
    %10 = arith.maximumf %8, %9 : vector<4x128xf32>
    %cst_7 = arith.constant 9.99999974E-6 : f32
    %11 = vector.broadcast %cst_7 : f32 to vector<4x128xf32>
    %12 = arith.addf %10, %11 : vector<4x128xf32>
    %13 = math.rsqrt %12 : vector<4x128xf32>
    %14 = arith.subf %2, %4 : vector<4x128xf32>
    %c0_8 = arith.constant 0 : index
    %c0_9 = arith.constant 0 : index
    %15 = vector.load %arg3[%c0_8, %c0_9] : memref<1x128xf32, #tpu.memory_space<vmem>>, vector<1x128xf32>
    %16 = vector.broadcast %15 : vector<1x128xf32> to vector<4x128xf32>
    %17 = arith.mulf %13, %16 : vector<4x128xf32>
    %18 = arith.mulf %14, %17 : vector<4x128xf32>
    %c0_10 = arith.constant 0 : index
    %c0_11 = arith.constant 0 : index
    %19 = vector.load %arg4[%c0_10, %c0_11] : memref<1x128xf32, #tpu.memory_space<vmem>>, vector<1x128xf32>
    %20 = vector.broadcast %19 : vector<1x128xf32> to vector<4x128xf32>
    %21 = arith.addf %18, %20 : vector<4x128xf32>
    %c0_12 = arith.constant 0 : index
    %c0_13 = arith.constant 0 : index
    %22 = vector.load %arg6[%c0_12, %c0_13] : memref<4x128xf32, #tpu.memory_space<vmem>>, vector<4x128xf32>
    tpu.vector_store %arg6[%c0_12, %c0_13], %21 {strides = array<i32>} : memref<4x128xf32, #tpu.memory_space<vmem>>, vector<4x128xf32>,
    return
  }
  func.func @transform_0(%arg0: i32) -> (i32, i32) {
    %c0_i32 = arith.constant 0 : i32
    %c0_i32_0 = arith.constant 0 : i32
    return %arg0, %c0_i32 : i32, i32
  }
  func.func @transform_1(%arg0: i32) -> (i32, i32) {
    %c0_i32 = arith.constant 0 : i32
    %c0_i32_0 = arith.constant 0 : i32
    return %arg0, %c0_i32 : i32, i32
  }
  func.func @transform_2(%arg0: i32) -> (i32, i32) {
    %c0_i32 = arith.constant 0 : i32
    %c0_i32_0 = arith.constant 0 : i32
    %c0_i32_1 = arith.constant 0 : i32
    return %c0_i32, %c0_i32_0 : i32, i32
  }
  func.func @transform_3(%arg0: i32) -> (i32, i32) {
    %c0_i32 = arith.constant 0 : i32
    %c0_i32_0 = arith.constant 0 : i32
    %c0_i32_1 = arith.constant 0 : i32
    return %c0_i32, %c0_i32_0 : i32, i32
  }
  func.func @transform_4(%arg0: i32) -> (i32, i32) {
    %c0_i32 = arith.constant 0 : i32
    %c0_i32_0 = arith.constant 0 : i32
    %c0_i32_1 = arith.constant 0 : i32
    return %c0_i32, %c0_i32_0 : i32, i32
  }
  func.func @transform_5(%arg0: i32) -> (i32, i32) {
    %c0_i32 = arith.constant 0 : i32
    %c0_i32_0 = arith.constant 0 : i32
    return %arg0, %c0_i32 : i32, i32
  }
}

</mosaic_0001>

<llo_original>
// kernel: tpu_custom_call.1
$region0: #{tpu_custom_call.1}
  #allocation0 [shape = 'u32[]', space=smem, size = 0x4, offset = 0x4, fixed_abs, tag = 'smem constant byte address 0x4 - core index']
  #allocation1 [shape = 'u32[144,128]{1,0:T(1,128)}', space=vmem, size = 0x12000, scoped, tag = 'internal scratch']
  %s0 = inlined_call_operand.hbm [shape: f32[4,128], index: 0, kind: input, shape index: {}]
  %s1 = inlined_call_operand.hbm [shape: f32[4,128], index: 1, kind: input, shape index: {}]
  %s2 = inlined_call_operand.vmem [shape: f32[1,128], index: 2, kind: input, shape index: {}]
  %s3 = inlined_call_operand.vmem [shape: f32[1,128], index: 3, kind: input, shape index: {}]
  %s4 = inlined_call_operand.hbm [shape: f32[128,128], index: 4, kind: input, shape index: {}]
  %s5 = inlined_call_operand.hbm [shape: f32[4,128], index: 5, kind: output, shape index: {}]
  %s6 = sld [smem:[#allocation0]]
  $region42: #{tpu_custom_call.1} parent=0
    _
  %s8 = ssub.s32 1, %s6
  %s9 = scalar_select 0, %s8, %s6
  $region1: #{tpu_custom_call.1} parent=0
    #allocation2 [shape = 'u8[2048]{0}', space=vmem, size = 0x800, scoped, tag = 'input window, operand 0, single buffered']
    #allocation3 [shape = 's32[1]{0}', space=sflag, size = 0x4, scoped, tag = 'scoped memory for tpu_custom_call.1']
    #allocation4 [shape = 's32[1]{0}', space=sflag, size = 0x4, scoped, tag = 'scoped memory for tpu_custom_call.1']
    #allocation5 [shape = 'u8[2048]{0}', space=vmem, size = 0x800, scoped, tag = 'input window, operand 1, single buffered']
    #allocation6 [shape = 's32[1]{0}', space=sflag, size = 0x4, scoped, tag = 'scoped memory for tpu_custom_call.1']
    #allocation7 [shape = 'u8[65536]{0}', space=vmem, size = 0x10000, scoped, tag = 'input window, operand 4, single buffered']
    #allocation8 [shape = 'u8[2048]{0}', space=vmem, size = 0x800, scoped, tag = 'output window, operand 0, single buffered']
    %10 = vsyncpa [#allocation3], 0
    %11 = vsyncpa [#allocation6], 0
    %12 = vsyncpa [#allocation4], 0
    // Predicated region
    $region2: #{tpu_custom_call.1} parent=1 // pred_check
      _
    $region3: #{tpu_custom_call.1} parent=1 // pred_check_branch
      %14 = sbr.rel (0) target = $region5
    $region4: #{tpu_custom_call.1} parent=1 // pred_region
      %s16 = ssub.s32 64, 64
      %17 = vsyncadd [#allocation3], %s16
      %s19 = sshll.u32 [#allocation2], 4
      %s20 = int_to_ptr.vmem [resolvable:$true] %s19
      %22 = dma.hbm_to_vmem [thread:$0]  %s0, 64, %s20, [#allocation3]
    $region5: #{tpu_custom_call.1} parent=1 // pred_fallthru
      _
    // Predicated region
    $region6: #{tpu_custom_call.1} parent=1 // pred_check
      _
    $region7: #{tpu_custom_call.1} parent=1 // pred_check_branch
      %24 = sbr.rel (0) target = $region9
    $region8: #{tpu_custom_call.1} parent=1 // pred_region
      %s26 = ssub.s32 64, 64
      %27 = vsyncadd [#allocation6], %s26
      %s29 = sshll.u32 [#allocation5], 4
      %s30 = int_to_ptr.vmem [resolvable:$true] %s29
      %32 = dma.hbm_to_vmem [thread:$0]  %s1, 64, %s30, [#allocation6]
    $region9: #{tpu_custom_call.1} parent=1 // pred_fallthru
      _
    // Predicated region
    $region10: #{tpu_custom_call.1} parent=1 // pred_check
      _
    $region11: #{tpu_custom_call.1} parent=1 // pred_check_branch
      %34 = sbr.rel (0) target = $region13
    $region12: #{tpu_custom_call.1} parent=1 // pred_region
      _
    $region13: #{tpu_custom_call.1} parent=1 // pred_fallthru
      _
    // Predicated region
    $region14: #{tpu_custom_call.1} parent=1 // pred_check
      _
    $region15: #{tpu_custom_call.1} parent=1 // pred_check_branch
      %36 = sbr.rel (0) target = $region17
    $region16: #{tpu_custom_call.1} parent=1 // pred_region
      _
    $region17: #{tpu_custom_call.1} parent=1 // pred_fallthru
      _
    // Predicated region
    $region18: #{tpu_custom_call.1} parent=1 // pred_check
      _
    $region19: #{tpu_custom_call.1} parent=1 // pred_check_branch
      %38 = sbr.rel (0) target = $region21
    $region20: #{tpu_custom_call.1} parent=1 // pred_region
      %s40 = ssub.s32 2048, 2048
      %41 = vsyncadd [#allocation6], %s40
      %s42 = sshll.u32 [#allocation7], 4
      %s43 = int_to_ptr.vmem [resolvable:$true] %s42
      %48 = dma.hbm_to_vmem [thread:$0]  %s4, 2048, %s43, [#allocation6], 128, 128, 8
    $region21: #{tpu_custom_call.1} parent=1 // pred_fallthru
      _
    // Predicated region
    $region22: #{tpu_custom_call.1} parent=1 // pred_check
      _
    $region23: #{tpu_custom_call.1} parent=1 // pred_check_branch
      %50 = sbr.rel (0) target = $region25
    $region24: #{tpu_custom_call.1} parent=1 // pred_region
      %51 = dma.done [#allocation3], 64
    $region25: #{tpu_custom_call.1} parent=1 // pred_fallthru
      _
    // Predicated region
    $region26: #{tpu_custom_call.1} parent=1 // pred_check
      _
    $region27: #{tpu_custom_call.1} parent=1 // pred_check_branch
      %53 = sbr.rel (0) target = $region29
    $region28: #{tpu_custom_call.1} parent=1 // pred_region
      %54 = dma.done [#allocation6], 64
    $region29: #{tpu_custom_call.1} parent=1 // pred_fallthru
      _
    // Predicated region
    $region30: #{tpu_custom_call.1} parent=1 // pred_check
      _
    $region31: #{tpu_custom_call.1} parent=1 // pred_check_branch
      %56 = sbr.rel (0) target = $region33
    $region32: #{tpu_custom_call.1} parent=1 // pred_region
      %57 = dma.done [#allocation6], 2048
    $region33: #{tpu_custom_call.1} parent=1 // pred_fallthru
      _
    %v58 = vld [vmem:[#allocation2] sm:$0xf]
    %v59 = vld [vmem:[#allocation5] sm:$0xf]
    %v60 = vadd.f32 %v58, %v59
    %v61 = vld [vmem:[#allocation7] sm:$0xff]
    %v62 = vld [vmem:[#allocation7 + $0x8] sm:$0xff]
    %v63 = vld [vmem:[#allocation7 + $0x10] sm:$0xff]
    %v64 = vld [vmem:[#allocation7 + $0x18] sm:$0xff]
    %v65 = vld [vmem:[#allocation7 + $0x20] sm:$0xff]
    %v66 = vld [vmem:[#allocation7 + $0x28] sm:$0xff]
    %v67 = vld [vmem:[#allocation7 + $0x30] sm:$0xff]
    %v68 = vld [vmem:[#allocation7 + $0x38] sm:$0xff]
    %v69 = vld [vmem:[#allocation7 + $0x40] sm:$0xff]
    %v70 = vld [vmem:[#allocation7 + $0x48] sm:$0xff]
    %v71 = vld [vmem:[#allocation7 + $0x50] sm:$0xff]
    %v72 = vld [vmem:[#allocation7 + $0x58] sm:$0xff]
    %v73 = vld [vmem:[#allocation7 + $0x60] sm:$0xff]
    %v74 = vld [vmem:[#allocation7 + $0x68] sm:$0xff]
    %v75 = vld [vmem:[#allocation7 + $0x70] sm:$0xff]
    %v76 = vld [vmem:[#allocation7 + $0x78] sm:$0xff]
    %77 = vmatprep.subr.mxu0 0.0
    %v78 = vand.u32 %v61, 4294901760
    %79 = vmatpush1.msra.mxu0 %v78
    %80 = vmatprep.subr.mxu0 0.0
    %v81 = vand.u32 %v62, 4294901760
    %82 = vmatpush1.msra.mxu0 %v81
    %83 = vmatprep.subr.mxu0 0.0
    %v84 = vand.u32 %v63, 4294901760
    %85 = vmatpush1.msra.mxu0 %v84
    %86 = vmatprep.subr.mxu0 0.0
    %v87 = vand.u32 %v64, 4294901760
    %88 = vmatpush1.msra.mxu0 %v87
    %89 = vmatprep.subr.mxu0 0.0
    %v90 = vand.u32 %v65, 4294901760
    %91 = vmatpush1.msra.mxu0 %v90
    %92 = vmatprep.subr.mxu0 0.0
    %v93 = vand.u32 %v66, 4294901760
    %94 = vmatpush1.msra.mxu0 %v93
    %95 = vmatprep.subr.mxu0 0.0
    %v96 = vand.u32 %v67, 4294901760
    %97 = vmatpush1.msra.mxu0 %v96
    %98 = vmatprep.subr.mxu0 0.0
    %v99 = vand.u32 %v68, 4294901760
    %100 = vmatpush1.msra.mxu0 %v99
    %101 = vmatprep.subr.mxu0 0.0
    %v102 = vand.u32 %v69, 4294901760
    %103 = vmatpush1.msra.mxu0 %v102
    %104 = vmatprep.subr.mxu0 0.0
    %v105 = vand.u32 %v70, 4294901760
    %106 = vmatpush1.msra.mxu0 %v105
    %107 = vmatprep.subr.mxu0 0.0
    %v108 = vand.u32 %v71, 4294901760
    %109 = vmatpush1.msra.mxu0 %v108
    %110 = vmatprep.subr.mxu0 0.0
    %v111 = vand.u32 %v72, 4294901760
    %112 = vmatpush1.msra.mxu0 %v111
    %113 = vmatprep.subr.mxu0 0.0
    %v114 = vand.u32 %v73, 4294901760
    %115 = vmatpush1.msra.mxu0 %v114
    %116 = vmatprep.subr.mxu0 0.0
    %v117 = vand.u32 %v74, 4294901760
    %118 = vmatpush1.msra.mxu0 %v117
    %119 = vmatprep.subr.mxu0 0.0
    %v120 = vand.u32 %v75, 4294901760
    %121 = vmatpush1.msra.mxu0 %v120
    %122 = vmatprep.subr.mxu0 0.0
    %v123 = vand.u32 %v76, 4294901760
    %124 = vmatpush1.msra.mxu0 %v123
    %125 = vmatprep.subr.mxu0 0.0
    %126 = vmatpush1.msra.mxu0 0.0
    %127 = vmatprep.subr.mxu0 0.0
    %128 = vmatpush1.msra.mxu0 0.0
    %129 = vmatprep.subr.mxu0 0.0
    %130 = vmatpush1.msra.mxu0 0.0
    %131 = vmatprep.subr.mxu0 0.0
    %132 = vmatpush1.msra.mxu0 0.0
    %133 = vmatprep.subr.mxu0 0.0
    %134 = vmatpush1.msra.mxu0 0.0
    %135 = vmatprep.subr.mxu0 0.0
    %136 = vmatpush1.msra.mxu0 0.0
    %137 = vmatprep.subr.mxu0 0.0
    %138 = vmatpush1.msra.mxu0 0.0
    %139 = vmatprep.subr.mxu0 0.0
    %140 = vmatpush1.msra.mxu0 0.0
    %141 = vmatprep.subr.mxu0 0.0
    %142 = vmatpush1.msra.mxu0 0.0
    %143 = vmatprep.subr.mxu0 0.0
    %144 = vmatpush1.msra.mxu0 0.0
    %145 = vmatprep.subr.mxu0 0.0
    %146 = vmatpush1.msra.mxu0 0.0
    %147 = vmatprep.subr.mxu0 0.0
    %148 = vmatpush1.msra.mxu0 0.0
    %149 = vmatprep.subr.mxu0 0.0
    %150 = vmatpush1.msra.mxu0 0.0
    %151 = vmatprep.subr.mxu0 0.0
    %152 = vmatpush1.msra.mxu0 0.0
    %153 = vmatprep.subr.mxu0 0.0
    %154 = vmatpush1.msra.mxu0 0.0
    %155 = vmatprep.subr.mxu0 0.0
    %156 = vmatpush1.msra.mxu0 0.0
    %157 = vmatprep.mubr.f32.mxu0 0.0
    %v158 = vand.u32 %v60, 4294901760
    %v159 = vsub.f32 %v60, %v158
    %v160 = vand.u32 %v159, 4294901760
    %v161 = vsub.f32 %v159, %v160
    %v162 = vand.u32 %v161, 4294901760
    %163 = vmatmul.mubr.f32.gmra.mrb[0].mxu0 %v162
    %v164 = vpop.f32.mrb[0].mxu0
    %v165 = vadd.f32 0.0, %v164
    %v166 = vpop.f32.mrb[0].mxu0
    %167 = vdwg.mxu0
    %168 = vmatprep.subr.mxu0 0.0
    %v169 = vand.u32 %v61, 4294901760
    %v170 = vsub.f32 %v61, %v169
    %v171 = vand.u32 %v170, 4294901760
    %v172 = vsub.f32 %v170, %v171
    %v173 = vand.u32 %v172, 4294901760
    %174 = vmatpush1.msra.mxu0 %v173
    %175 = vmatprep.subr.mxu0 0.0
    %v176 = vand.u32 %v62, 4294901760
    %v177 = vsub.f32 %v62, %v176
    %v178 = vand.u32 %v177, 4294901760
    %v179 = vsub.f32 %v177, %v178
    %v180 = vand.u32 %v179, 4294901760
    %181 = vmatpush1.msra.mxu0 %v180
    %182 = vmatprep.subr.mxu0 0.0
    %v183 = vand.u32 %v63, 4294901760
    %v184 = vsub.f32 %v63, %v183
    %v185 = vand.u32 %v184, 4294901760
    %v186 = vsub.f32 %v184, %v185
    %v187 = vand.u32 %v186, 4294901760
    %188 = vmatpush1.msra.mxu0 %v187
    %189 = vmatprep.subr.mxu0 0.0
    %v190 = vand.u32 %v64, 4294901760
    %v191 = vsub.f32 %v64, %v190
    %v192 = vand.u32 %v191, 4294901760
    %v193 = vsub.f32 %v191, %v192
    %v194 = vand.u32 %v193, 4294901760
    %195 = vmatpush1.msra.mxu0 %v194
    %196 = vmatprep.subr.mxu0 0.0
    %v197 = vand.u32 %v65, 4294901760
    %v198 = vsub.f32 %v65, %v197
    %v199 = vand.u32 %v198, 4294901760
    %v200 = vsub.f32 %v198, %v199
    %v201 = vand.u32 %v200, 4294901760
    %202 = vmatpush1.msra.mxu0 %v201
    %203 = vmatprep.subr.mxu0 0.0
    %v204 = vand.u32 %v66, 4294901760
    %v205 = vsub.f32 %v66, %v204
    %v206 = vand.u32 %v205, 4294901760
    %v207 = vsub.f32 %v205, %v206
    %v208 = vand.u32 %v207, 4294901760
    %209 = vmatpush1.msra.mxu0 %v208
    %210 = vmatprep.subr.mxu0 0.0
    %v211 = vand.u32 %v67, 4294901760
    %v212 = vsub.f32 %v67, %v211
    %v213 = vand.u32 %v212, 4294901760
    %v214 = vsub.f32 %v212, %v213
    %v215 = vand.u32 %v214, 4294901760
    %216 = vmatpush1.msra.mxu0 %v215
    %217 = vmatprep.subr.mxu0 0.0
    %v218 = vand.u32 %v68, 4294901760
    %v219 = vsub.f32 %v68, %v218
    %v220 = vand.u32 %v219, 4294901760
    %v221 = vsub.f32 %v219, %v220
    %v222 = vand.u32 %v221, 4294901760
    %223 = vmatpush1.msra.mxu0 %v222
    %224 = vmatprep.subr.mxu0 0.0
    %v225 = vand.u32 %v69, 4294901760
    %v226 = vsub.f32 %v69, %v225
    %v227 = vand.u32 %v226, 4294901760
    %v228 = vsub.f32 %v226, %v227
    %v229 = vand.u32 %v228, 4294901760
    %230 = vmatpush1.msra.mxu0 %v229
    %231 = vmatprep.subr.mxu0 0.0
    %v232 = vand.u32 %v70, 4294901760
    %v233 = vsub.f32 %v70, %v232
    %v234 = vand.u32 %v233, 4294901760
    %v235 = vsub.f32 %v233, %v234
    %v236 = vand.u32 %v235, 4294901760
    %237 = vmatpush1.msra.mxu0 %v236
    %238 = vmatprep.subr.mxu0 0.0
    %v239 = vand.u32 %v71, 4294901760
    %v240 = vsub.f32 %v71, %v239
    %v241 = vand.u32 %v240, 4294901760
    %v242 = vsub.f32 %v240, %v241
    %v243 = vand.u32 %v242, 4294901760
    %244 = vmatpush1.msra.mxu0 %v243
    %245 = vmatprep.subr.mxu0 0.0
    %v246 = vand.u32 %v72, 4294901760
    %v247 = vsub.f32 %v72, %v246
    %v248 = vand.u32 %v247, 4294901760
    %v249 = vsub.f32 %v247, %v248
    %v250 = vand.u32 %v249, 4294901760
    %251 = vmatpush1.msra.mxu0 %v250
    %252 = vmatprep.subr.mxu0 0.0
    %v253 = vand.u32 %v73, 4294901760
    %v254 = vsub.f32 %v73, %v253
    %v255 = vand.u32 %v254, 4294901760
    %v256 = vsub.f32 %v254, %v255
    %v257 = vand.u32 %v256, 4294901760
    %258 = vmatpush1.msra.mxu0 %v257
    %259 = vmatprep.subr.mxu0 0.0
    %v260 = vand.u32 %v74, 4294901760
    %v261 = vsub.f32 %v74, %v260
    %v262 = vand.u32 %v261, 4294901760
    %v263 = vsub.f32 %v261, %v262
    %v264 = vand.u32 %v263, 4294901760
    %265 = vmatpush1.msra.mxu0 %v264
    %266 = vmatprep.subr.mxu0 0.0
    %v267 = vand.u32 %v75, 4294901760
    %v268 = vsub.f32 %v75, %v267
    %v269 = vand.u32 %v268, 4294901760
    %v270 = vsub.f32 %v268, %v269
    %v271 = vand.u32 %v270, 4294901760
    %272 = vmatpush1.msra.mxu0 %v271
    %273 = vmatprep.subr.mxu0 0.0
    %v274 = vand.u32 %v76, 4294901760
    %v275 = vsub.f32 %v76, %v274
    %v276 = vand.u32 %v275, 4294901760
    %v277 = vsub.f32 %v275, %v276
    %v278 = vand.u32 %v277, 4294901760
    %279 = vmatpush1.msra.mxu0 %v278
    %280 = vmatprep.subr.mxu0 0.0
    %281 = vmatpush1.msra.mxu0 0.0
    %282 = vmatprep.subr.mxu0 0.0
    %283 = vmatpush1.msra.mxu0 0.0
    %284 = vmatprep.subr.mxu0 0.0
    %285 = vmatpush1.msra.mxu0 0.0
    %286 = vmatprep.subr.mxu0 0.0
    %287 = vmatpush1.msra.mxu0 0.0
    %288 = vmatprep.subr.mxu0 0.0
    %289 = vmatpush1.msra.mxu0 0.0
    %290 = vmatprep.subr.mxu0 0.0
    %291 = vmatpush1.msra.mxu0 0.0
    %292 = vmatprep.subr.mxu0 0.0
    %293 = vmatpush1.msra.mxu0 0.0
    %294 = vmatprep.subr.mxu0 0.0
    %295 = vmatpush1.msra.mxu0 0.0
    %296 = vmatprep.subr.mxu0 0.0
    %297 = vmatpush1.msra.mxu0 0.0
    %298 = vmatprep.subr.mxu0 0.0
    %299 = vmatpush1.msra.mxu0 0.0
    %300 = vmatprep.subr.mxu0 0.0
    %301 = vmatpush1.msra.mxu0 0.0
    %302 = vmatprep.subr.mxu0 0.0
    %303 = vmatpush1.msra.mxu0 0.0
    %304 = vmatprep.subr.mxu0 0.0
    %305 = vmatpush1.msra.mxu0 0.0
    %306 = vmatprep.subr.mxu0 0.0
    %307 = vmatpush1.msra.mxu0 0.0
    %308 = vmatprep.subr.mxu0 0.0
    %309 = vmatpush1.msra.mxu0 0.0
    %310 = vmatprep.subr.mxu0 0.0
    %311 = vmatpush1.msra.mxu0 0.0
    %312 = vmatprep.mubr.f32.mxu0 0.0
    %v313 = vand.u32 %v60, 4294901760
    %314 = vmatmul.mubr.f32.gmra.mrb[0].mxu0 %v313
    %v315 = vpop.f32.mrb[0].mxu0
    %v316 = vadd.f32 %v165, %v315
    %v317 = vpop.f32.mrb[0].mxu0
    %318 = vdwg.mxu0
    %319 = vmatprep.subr.mxu0 0.0
    %v320 = vand.u32 %v61, 4294901760
    %v321 = vsub.f32 %v61, %v320
    %322 = vmatpush1.msra.mxu0 %v321
    %323 = vmatprep.subr.mxu0 0.0
    %v324 = vand.u32 %v62, 4294901760
    %v325 = vsub.f32 %v62, %v324
    %326 = vmatpush1.msra.mxu0 %v325
    %327 = vmatprep.subr.mxu0 0.0
    %v328 = vand.u32 %v63, 4294901760
    %v329 = vsub.f32 %v63, %v328
    %330 = vmatpush1.msra.mxu0 %v329
    %331 = vmatprep.subr.mxu0 0.0
    %v332 = vand.u32 %v64, 4294901760
    %v333 = vsub.f32 %v64, %v332
    %334 = vmatpush1.msra.mxu0 %v333
    %335 = vmatprep.subr.mxu0 0.0
    %v336 = vand.u32 %v65, 4294901760
    %v337 = vsub.f32 %v65, %v336
    %338 = vmatpush1.msra.mxu0 %v337
    %339 = vmatprep.subr.mxu0 0.0
    %v340 = vand.u32 %v66, 4294901760
    %v341 = vsub.f32 %v66, %v340
    %342 = vmatpush1.msra.mxu0 %v341
    %343 = vmatprep.subr.mxu0 0.0
    %v344 = vand.u32 %v67, 4294901760
    %v345 = vsub.f32 %v67, %v344
    %346 = vmatpush1.msra.mxu0 %v345
    %347 = vmatprep.subr.mxu0 0.0
    %v348 = vand.u32 %v68, 4294901760
    %v349 = vsub.f32 %v68, %v348
    %350 = vmatpush1.msra.mxu0 %v349
    %351 = vmatprep.subr.mxu0 0.0
    %v352 = vand.u32 %v69, 4294901760
    %v353 = vsub.f32 %v69, %v352
    %354 = vmatpush1.msra.mxu0 %v353
    %355 = vmatprep.subr.mxu0 0.0
    %v356 = vand.u32 %v70, 4294901760
    %v357 = vsub.f32 %v70, %v356
    %358 = vmatpush1.msra.mxu0 %v357
    %359 = vmatprep.subr.mxu0 0.0
    %v360 = vand.u32 %v71, 4294901760
    %v361 = vsub.f32 %v71, %v360
    %362 = vmatpush1.msra.mxu0 %v361
    %363 = vmatprep.subr.mxu0 0.0
    %v364 = vand.u32 %v72, 4294901760
    %v365 = vsub.f32 %v72, %v364
    %366 = vmatpush1.msra.mxu0 %v365
    %367 = vmatprep.subr.mxu0 0.0
    %v368 = vand.u32 %v73, 4294901760
    %v369 = vsub.f32 %v73, %v368
    %370 = vmatpush1.msra.mxu0 %v369
    %371 = vmatprep.subr.mxu0 0.0
    %v372 = vand.u32 %v74, 4294901760
    %v373 = vsub.f32 %v74, %v372
    %374 = vmatpush1.msra.mxu0 %v373
    %375 = vmatprep.subr.mxu0 0.0
    %v376 = vand.u32 %v75, 4294901760
    %v377 = vsub.f32 %v75, %v376
    %378 = vmatpush1.msra.mxu0 %v377
    %379 = vmatprep.subr.mxu0 0.0
    %v380 = vand.u32 %v76, 4294901760
    %v381 = vsub.f32 %v76, %v380
    %382 = vmatpush1.msra.mxu0 %v381
    %383 = vmatprep.subr.mxu0 0.0
    %384 = vmatpush1.msra.mxu0 0.0
    %385 = vmatprep.subr.mxu0 0.0
    %386 = vmatpush1.msra.mxu0 0.0
    %387 = vmatprep.subr.mxu0 0.0
    %388 = vmatpush1.msra.mxu0 0.0
    %389 = vmatprep.subr.mxu0 0.0
    %390 = vmatpush1.msra.mxu0 0.0
    %391 = vmatprep.subr.mxu0 0.0
    %392 = vmatpush1.msra.mxu0 0.0
    %393 = vmatprep.subr.mxu0 0.0
    %394 = vmatpush1.msra.mxu0 0.0
    %395 = vmatprep.subr.mxu0 0.0
    %396 = vmatpush1.msra.mxu0 0.0
    %397 = vmatprep.subr.mxu0 0.0
    %398 = vmatpush1.msra.mxu0 0.0
    %399 = vmatprep.subr.mxu0 0.0
    %400 = vmatpush1.msra.mxu0 0.0
    %401 = vmatprep.subr.mxu0 0.0
    %402 = vmatpush1.msra.mxu0 0.0
    %403 = vmatprep.subr.mxu0 0.0
    %404 = vmatpush1.msra.mxu0 0.0
    %405 = vmatprep.subr.mxu0 0.0
    %406 = vmatpush1.msra.mxu0 0.0
    %407 = vmatprep.subr.mxu0 0.0
    %408 = vmatpush1.msra.mxu0 0.0
    %409 = vmatprep.subr.mxu0 0.0
    %410 = vmatpush1.msra.mxu0 0.0
    %411 = vmatprep.subr.mxu0 0.0
    %412 = vmatpush1.msra.mxu0 0.0
    %413 = vmatprep.subr.mxu0 0.0
    %414 = vmatpush1.msra.mxu0 0.0
    %415 = vmatprep.mubr.f32.mxu0 0.0
    %v416 = vand.u32 %v60, 4294901760
    %v417 = vsub.f32 %v60, %v416
    %418 = vmatmul.mubr.f32.gmra.mrb[0].mxu0 %v417
    %v419 = vpop.f32.mrb[0].mxu0
    %v420 = vadd.f32 %v316, %v419
    %v421 = vpop.f32.mrb[0].mxu0
    %422 = vdwg.mxu0
    %423 = vmatprep.subr.mxu0 0.0
    %v424 = vand.u32 %v61, 4294901760
    %425 = vmatpush1.msra.mxu0 %v424
    %426 = vmatprep.subr.mxu0 0.0
    %v427 = vand.u32 %v62, 4294901760
    %428 = vmatpush1.msra.mxu0 %v427
    %429 = vmatprep.subr.mxu0 0.0
    %v430 = vand.u32 %v63, 4294901760
    %431 = vmatpush1.msra.mxu0 %v430
    %432 = vmatprep.subr.mxu0 0.0
    %v433 = vand.u32 %v64, 4294901760
    %434 = vmatpush1.msra.mxu0 %v433
    %435 = vmatprep.subr.mxu0 0.0
    %v436 = vand.u32 %v65, 4294901760
    %437 = vmatpush1.msra.mxu0 %v436
    %438 = vmatprep.subr.mxu0 0.0
    %v439 = vand.u32 %v66, 4294901760
    %440 = vmatpush1.msra.mxu0 %v439
    %441 = vmatprep.subr.mxu0 0.0
    %v442 = vand.u32 %v67, 4294901760
    %443 = vmatpush1.msra.mxu0 %v442
    %444 = vmatprep.subr.mxu0 0.0
    %v445 = vand.u32 %v68, 4294901760
    %446 = vmatpush1.msra.mxu0 %v445
    %447 = vmatprep.subr.mxu0 0.0
    %v448 = vand.u32 %v69, 4294901760
    %449 = vmatpush1.msra.mxu0 %v448
    %450 = vmatprep.subr.mxu0 0.0
    %v451 = vand.u32 %v70, 4294901760
    %452 = vmatpush1.msra.mxu0 %v451
    %453 = vmatprep.subr.mxu0 0.0
    %v454 = vand.u32 %v71, 4294901760
    %455 = vmatpush1.msra.mxu0 %v454
    %456 = vmatprep.subr.mxu0 0.0
    %v457 = vand.u32 %v72, 4294901760
    %458 = vmatpush1.msra.mxu0 %v457
    %459 = vmatprep.subr.mxu0 0.0
    %v460 = vand.u32 %v73, 4294901760
    %461 = vmatpush1.msra.mxu0 %v460
    %462 = vmatprep.subr.mxu0 0.0
    %v463 = vand.u32 %v74, 4294901760
    %464 = vmatpush1.msra.mxu0 %v463
    %465 = vmatprep.subr.mxu0 0.0
    %v466 = vand.u32 %v75, 4294901760
    %467 = vmatpush1.msra.mxu0 %v466
    %468 = vmatprep.subr.mxu0 0.0
    %v469 = vand.u32 %v76, 4294901760
    %470 = vmatpush1.msra.mxu0 %v469
    %471 = vmatprep.subr.mxu0 0.0
    %472 = vmatpush1.msra.mxu0 0.0
    %473 = vmatprep.subr.mxu0 0.0
    %474 = vmatpush1.msra.mxu0 0.0
    %475 = vmatprep.subr.mxu0 0.0
    %476 = vmatpush1.msra.mxu0 0.0
    %477 = vmatprep.subr.mxu0 0.0
    %478 = vmatpush1.msra.mxu0 0.0
    %479 = vmatprep.subr.mxu0 0.0
    %480 = vmatpush1.msra.mxu0 0.0
    %481 = vmatprep.subr.mxu0 0.0
    %482 = vmatpush1.msra.mxu0 0.0
    %483 = vmatprep.subr.mxu0 0.0
    %484 = vmatpush1.msra.mxu0 0.0
    %485 = vmatprep.subr.mxu0 0.0
    %486 = vmatpush1.msra.mxu0 0.0
    %487 = vmatprep.subr.mxu0 0.0
    %488 = vmatpush1.msra.mxu0 0.0
    %489 = vmatprep.subr.mxu0 0.0
    %490 = vmatpush1.msra.mxu0 0.0
    %491 = vmatprep.subr.mxu0 0.0
    %492 = vmatpush1.msra.mxu0 0.0
    %493 = vmatprep.subr.mxu0 0.0
    %494 = vmatpush1.msra.mxu0 0.0
    %495 = vmatprep.subr.mxu0 0.0
    %496 = vmatpush1.msra.mxu0 0.0
    %497 = vmatprep.subr.mxu0 0.0
    %498 = vmatpush1.msra.mxu0 0.0
    %499 = vmatprep.subr.mxu0 0.0
    %500 = vmatpush1.msra.mxu0 0.0
    %501 = vmatprep.subr.mxu0 0.0
    %502 = vmatpush1.msra.mxu0 0.0
    %503 = vmatprep.mubr.f32.mxu0 0.0
    %v504 = vand.u32 %v60, 4294901760
    %v505 = vsub.f32 %v60, %v504
    %v506 = vand.u32 %v505, 4294901760
    %507 = vmatmul.mubr.f32.gmra.mrb[0].mxu0 %v506
    %v508 = vpop.f32.mrb[0].mxu0
    %v509 = vadd.f32 %v420, %v508
    %v510 = vpop.f32.mrb[0].mxu0
    %511 = vdwg.mxu0
    %512 = vmatprep.subr.mxu0 0.0
    %v513 = vand.u32 %v61, 4294901760
    %v514 = vsub.f32 %v61, %v513
    %v515 = vand.u32 %v514, 4294901760
    %516 = vmatpush1.msra.mxu0 %v515
    %517 = vmatprep.subr.mxu0 0.0
    %v518 = vand.u32 %v62, 4294901760
    %v519 = vsub.f32 %v62, %v518
    %v520 = vand.u32 %v519, 4294901760
    %521 = vmatpush1.msra.mxu0 %v520
    %522 = vmatprep.subr.mxu0 0.0
    %v523 = vand.u32 %v63, 4294901760
    %v524 = vsub.f32 %v63, %v523
    %v525 = vand.u32 %v524, 4294901760
    %526 = vmatpush1.msra.mxu0 %v525
    %527 = vmatprep.subr.mxu0 0.0
    %v528 = vand.u32 %v64, 4294901760
    %v529 = vsub.f32 %v64, %v528
    %v530 = vand.u32 %v529, 4294901760
    %531 = vmatpush1.msra.mxu0 %v530
    %532 = vmatprep.subr.mxu0 0.0
    %v533 = vand.u32 %v65, 4294901760
    %v534 = vsub.f32 %v65, %v533
    %v535 = vand.u32 %v534, 4294901760
    %536 = vmatpush1.msra.mxu0 %v535
    %537 = vmatprep.subr.mxu0 0.0
    %v538 = vand.u32 %v66, 4294901760
    %v539 = vsub.f32 %v66, %v538
    %v540 = vand.u32 %v539, 4294901760
    %541 = vmatpush1.msra.mxu0 %v540
    %542 = vmatprep.subr.mxu0 0.0
    %v543 = vand.u32 %v67, 4294901760
    %v544 = vsub.f32 %v67, %v543
    %v545 = vand.u32 %v544, 4294901760
    %546 = vmatpush1.msra.mxu0 %v545
    %547 = vmatprep.subr.mxu0 0.0
    %v548 = vand.u32 %v68, 4294901760
    %v549 = vsub.f32 %v68, %v548
    %v550 = vand.u32 %v549, 4294901760
    %551 = vmatpush1.msra.mxu0 %v550
    %552 = vmatprep.subr.mxu0 0.0
    %v553 = vand.u32 %v69, 4294901760
    %v554 = vsub.f32 %v69, %v553
    %v555 = vand.u32 %v554, 4294901760
    %556 = vmatpush1.msra.mxu0 %v555
    %557 = vmatprep.subr.mxu0 0.0
    %v558 = vand.u32 %v70, 4294901760
    %v559 = vsub.f32 %v70, %v558
    %v560 = vand.u32 %v559, 4294901760
    %561 = vmatpush1.msra.mxu0 %v560
    %562 = vmatprep.subr.mxu0 0.0
    %v563 = vand.u32 %v71, 4294901760
    %v564 = vsub.f32 %v71, %v563
    %v565 = vand.u32 %v564, 4294901760
    %566 = vmatpush1.msra.mxu0 %v565
    %567 = vmatprep.subr.mxu0 0.0
    %v568 = vand.u32 %v72, 4294901760
    %v569 = vsub.f32 %v72, %v568
    %v570 = vand.u32 %v569, 4294901760
    %571 = vmatpush1.msra.mxu0 %v570
    %572 = vmatprep.subr.mxu0 0.0
    %v573 = vand.u32 %v73, 4294901760
    %v574 = vsub.f32 %v73, %v573
    %v575 = vand.u32 %v574, 4294901760
    %576 = vmatpush1.msra.mxu0 %v575
    %577 = vmatprep.subr.mxu0 0.0
    %v578 = vand.u32 %v74, 4294901760
    %v579 = vsub.f32 %v74, %v578
    %v580 = vand.u32 %v579, 4294901760
    %581 = vmatpush1.msra.mxu0 %v580
    %582 = vmatprep.subr.mxu0 0.0
    %v583 = vand.u32 %v75, 4294901760
    %v584 = vsub.f32 %v75, %v583
    %v585 = vand.u32 %v584, 4294901760
    %586 = vmatpush1.msra.mxu0 %v585
    %587 = vmatprep.subr.mxu0 0.0
    %v588 = vand.u32 %v76, 4294901760
    %v589 = vsub.f32 %v76, %v588
    %v590 = vand.u32 %v589, 4294901760
    %591 = vmatpush1.msra.mxu0 %v590
    %592 = vmatprep.subr.mxu0 0.0
    %593 = vmatpush1.msra.mxu0 0.0
    %594 = vmatprep.subr.mxu0 0.0
    %595 = vmatpush1.msra.mxu0 0.0
    %596 = vmatprep.subr.mxu0 0.0
    %597 = vmatpush1.msra.mxu0 0.0
    %598 = vmatprep.subr.mxu0 0.0
    %599 = vmatpush1.msra.mxu0 0.0
    %600 = vmatprep.subr.mxu0 0.0
    %601 = vmatpush1.msra.mxu0 0.0
    %602 = vmatprep.subr.mxu0 0.0
    %603 = vmatpush1.msra.mxu0 0.0
    %604 = vmatprep.subr.mxu0 0.0
    %605 = vmatpush1.msra.mxu0 0.0
    %606 = vmatprep.subr.mxu0 0.0
    %607 = vmatpush1.msra.mxu0 0.0
    %608 = vmatprep.subr.mxu0 0.0
    %609 = vmatpush1.msra.mxu0 0.0
    %610 = vmatprep.subr.mxu0 0.0
    %611 = vmatpush1.msra.mxu0 0.0
    %612 = vmatprep.subr.mxu0 0.0
    %613 = vmatpush1.msra.mxu0 0.0
    %614 = vmatprep.subr.mxu0 0.0
    %615 = vmatpush1.msra.mxu0 0.0
    %616 = vmatprep.subr.mxu0 0.0
    %617 = vmatpush1.msra.mxu0 0.0
    %618 = vmatprep.subr.mxu0 0.0
    %619 = vmatpush1.msra.mxu0 0.0
    %620 = vmatprep.subr.mxu0 0.0
    %621 = vmatpush1.msra.mxu0 0.0
    %622 = vmatprep.subr.mxu0 0.0
    %623 = vmatpush1.msra.mxu0 0.0
    %624 = vmatprep.mubr.f32.mxu0 0.0
    %v625 = vand.u32 %v60, 4294901760
    %626 = vmatmul.mubr.f32.gmra.mrb[0].mxu0 %v625
    %v627 = vpop.f32.mrb[0].mxu0
    %v628 = vadd.f32 %v509, %v627
    %v629 = vpop.f32.mrb[0].mxu0
    %630 = vdwg.mxu0
    %631 = vmatprep.subr.mxu0 0.0
    %v632 = vand.u32 %v61, 4294901760
    %633 = vmatpush1.msra.mxu0 %v632
    %634 = vmatprep.subr.mxu0 0.0
    %v635 = vand.u32 %v62, 4294901760
    %636 = vmatpush1.msra.mxu0 %v635
    %637 = vmatprep.subr.mxu0 0.0
    %v638 = vand.u32 %v63, 4294901760
    %639 = vmatpush1.msra.mxu0 %v638
    %640 = vmatprep.subr.mxu0 0.0
    %v641 = vand.u32 %v64, 4294901760
    %642 = vmatpush1.msra.mxu0 %v641
    %643 = vmatprep.subr.mxu0 0.0
    %v644 = vand.u32 %v65, 4294901760
    %645 = vmatpush1.msra.mxu0 %v644
    %646 = vmatprep.subr.mxu0 0.0
    %v647 = vand.u32 %v66, 4294901760
    %648 = vmatpush1.msra.mxu0 %v647
    %649 = vmatprep.subr.mxu0 0.0
    %v650 = vand.u32 %v67, 4294901760
    %651 = vmatpush1.msra.mxu0 %v650
    %652 = vmatprep.subr.mxu0 0.0
    %v653 = vand.u32 %v68, 4294901760
    %654 = vmatpush1.msra.mxu0 %v653
    %655 = vmatprep.subr.mxu0 0.0
    %v656 = vand.u32 %v69, 4294901760
    %657 = vmatpush1.msra.mxu0 %v656
    %658 = vmatprep.subr.mxu0 0.0
    %v659 = vand.u32 %v70, 4294901760
    %660 = vmatpush1.msra.mxu0 %v659
    %661 = vmatprep.subr.mxu0 0.0
    %v662 = vand.u32 %v71, 4294901760
    %663 = vmatpush1.msra.mxu0 %v662
    %664 = vmatprep.subr.mxu0 0.0
    %v665 = vand.u32 %v72, 4294901760
    %666 = vmatpush1.msra.mxu0 %v665
    %667 = vmatprep.subr.mxu0 0.0
    %v668 = vand.u32 %v73, 4294901760
    %669 = vmatpush1.msra.mxu0 %v668
    %670 = vmatprep.subr.mxu0 0.0
    %v671 = vand.u32 %v74, 4294901760
    %672 = vmatpush1.msra.mxu0 %v671
    %673 = vmatprep.subr.mxu0 0.0
    %v674 = vand.u32 %v75, 4294901760
    %675 = vmatpush1.msra.mxu0 %v674
    %676 = vmatprep.subr.mxu0 0.0
    %v677 = vand.u32 %v76, 4294901760
    %678 = vmatpush1.msra.mxu0 %v677
    %679 = vmatprep.subr.mxu0 0.0
    %680 = vmatpush1.msra.mxu0 0.0
    %681 = vmatprep.subr.mxu0 0.0
    %682 = vmatpush1.msra.mxu0 0.0
    %683 = vmatprep.subr.mxu0 0.0
    %684 = vmatpush1.msra.mxu0 0.0
    %685 = vmatprep.subr.mxu0 0.0
    %686 = vmatpush1.msra.mxu0 0.0
    %687 = vmatprep.subr.mxu0 0.0
    %688 = vmatpush1.msra.mxu0 0.0
    %689 = vmatprep.subr.mxu0 0.0
    %690 = vmatpush1.msra.mxu0 0.0
    %691 = vmatprep.subr.mxu0 0.0
    %692 = vmatpush1.msra.mxu0 0.0
    %693 = vmatprep.subr.mxu0 0.0
    %694 = vmatpush1.msra.mxu0 0.0
    %695 = vmatprep.subr.mxu0 0.0
    %696 = vmatpush1.msra.mxu0 0.0
    %697 = vmatprep.subr.mxu0 0.0
    %698 = vmatpush1.msra.mxu0 0.0
    %699 = vmatprep.subr.mxu0 0.0
    %700 = vmatpush1.msra.mxu0 0.0
    %701 = vmatprep.subr.mxu0 0.0
    %702 = vmatpush1.msra.mxu0 0.0
    %703 = vmatprep.subr.mxu0 0.0
    %704 = vmatpush1.msra.mxu0 0.0
    %705 = vmatprep.subr.mxu0 0.0
    %706 = vmatpush1.msra.mxu0 0.0
    %707 = vmatprep.subr.mxu0 0.0
    %708 = vmatpush1.msra.mxu0 0.0
    %709 = vmatprep.subr.mxu0 0.0
    %710 = vmatpush1.msra.mxu0 0.0
    %711 = vmatprep.mubr.f32.mxu0 0.0
    %v712 = vand.u32 %v60, 4294901760
    %713 = vmatmul.mubr.f32.gmra.mrb[0].mxu0 %v712
    %v714 = vpop.f32.mrb[0].mxu0
    %v715 = vadd.f32 %v628, %v714
    %v716 = vpop.f32.mrb[0].mxu0
    %717 = vdwg.mxu0
    %v718 = vmul.f32 %v60, %v60
    %719 = vmatprep.subr.mxu0 0.0
    %v720 = vand.u32 %v61, 4294901760
    %721 = vmatpush1.msra.mxu0 %v720
    %722 = vmatprep.subr.mxu0 0.0
    %v723 = vand.u32 %v62, 4294901760
    %724 = vmatpush1.msra.mxu0 %v723
    %725 = vmatprep.subr.mxu0 0.0
    %v726 = vand.u32 %v63, 4294901760
    %727 = vmatpush1.msra.mxu0 %v726
    %728 = vmatprep.subr.mxu0 0.0
    %v729 = vand.u32 %v64, 4294901760
    %730 = vmatpush1.msra.mxu0 %v729
    %731 = vmatprep.subr.mxu0 0.0
    %v732 = vand.u32 %v65, 4294901760
    %733 = vmatpush1.msra.mxu0 %v732
    %734 = vmatprep.subr.mxu0 0.0
    %v735 = vand.u32 %v66, 4294901760
    %736 = vmatpush1.msra.mxu0 %v735
    %737 = vmatprep.subr.mxu0 0.0
    %v738 = vand.u32 %v67, 4294901760
    %739 = vmatpush1.msra.mxu0 %v738
    %740 = vmatprep.subr.mxu0 0.0
    %v741 = vand.u32 %v68, 4294901760
    %742 = vmatpush1.msra.mxu0 %v741
    %743 = vmatprep.subr.mxu0 0.0
    %v744 = vand.u32 %v69, 4294901760
    %745 = vmatpush1.msra.mxu0 %v744
    %746 = vmatprep.subr.mxu0 0.0
    %v747 = vand.u32 %v70, 4294901760
    %748 = vmatpush1.msra.mxu0 %v747
    %749 = vmatprep.subr.mxu0 0.0
    %v750 = vand.u32 %v71, 4294901760
    %751 = vmatpush1.msra.mxu0 %v750
    %752 = vmatprep.subr.mxu0 0.0
    %v753 = vand.u32 %v72, 4294901760
    %754 = vmatpush1.msra.mxu0 %v753
    %755 = vmatprep.subr.mxu0 0.0
    %v756 = vand.u32 %v73, 4294901760
    %757 = vmatpush1.msra.mxu0 %v756
    %758 = vmatprep.subr.mxu0 0.0
    %v759 = vand.u32 %v74, 4294901760
    %760 = vmatpush1.msra.mxu0 %v759
    %761 = vmatprep.subr.mxu0 0.0
    %v762 = vand.u32 %v75, 4294901760
    %763 = vmatpush1.msra.mxu0 %v762
    %764 = vmatprep.subr.mxu0 0.0
    %v765 = vand.u32 %v76, 4294901760
    %766 = vmatpush1.msra.mxu0 %v765
    %767 = vmatprep.subr.mxu0 0.0
    %768 = vmatpush1.msra.mxu0 0.0
    %769 = vmatprep.subr.mxu0 0.0
    %770 = vmatpush1.msra.mxu0 0.0
    %771 = vmatprep.subr.mxu0 0.0
    %772 = vmatpush1.msra.mxu0 0.0
    %773 = vmatprep.subr.mxu0 0.0
    %774 = vmatpush1.msra.mxu0 0.0
    %775 = vmatprep.subr.mxu0 0.0
    %776 = vmatpush1.msra.mxu0 0.0
    %777 = vmatprep.subr.mxu0 0.0
    %778 = vmatpush1.msra.mxu0 0.0
    %779 = vmatprep.subr.mxu0 0.0
    %780 = vmatpush1.msra.mxu0 0.0
    %781 = vmatprep.subr.mxu0 0.0
    %782 = vmatpush1.msra.mxu0 0.0
    %783 = vmatprep.subr.mxu0 0.0
    %784 = vmatpush1.msra.mxu0 0.0
    %785 = vmatprep.subr.mxu0 0.0
    %786 = vmatpush1.msra.mxu0 0.0
    %787 = vmatprep.subr.mxu0 0.0
    %788 = vmatpush1.msra.mxu0 0.0
    %789 = vmatprep.subr.mxu0 0.0
    %790 = vmatpush1.msra.mxu0 0.0
    %791 = vmatprep.subr.mxu0 0.0
    %792 = vmatpush1.msra.mxu0 0.0
    %793 = vmatprep.subr.mxu0 0.0
    %794 = vmatpush1.msra.mxu0 0.0
    %795 = vmatprep.subr.mxu0 0.0
    %796 = vmatpush1.msra.mxu0 0.0
    %797 = vmatprep.subr.mxu0 0.0
    %798 = vmatpush1.msra.mxu0 0.0
    %799 = vmatprep.mubr.f32.mxu0 0.0
    %v800 = vand.u32 %v718, 4294901760
    %v801 = vsub.f32 %v718, %v800
    %v802 = vand.u32 %v801, 4294901760
    %v803 = vsub.f32 %v801, %v802
    %v804 = vand.u32 %v803, 4294901760
    %805 = vmatmul.mubr.f32.gmra.mrb[0].mxu0 %v804
    %v806 = vpop.f32.mrb[0].mxu0
    %v807 = vadd.f32 0.0, %v806
    %v808 = vpop.f32.mrb[0].mxu0
    %809 = vdwg.mxu0
    %810 = vmatprep.subr.mxu0 0.0
    %v811 = vand.u32 %v61, 4294901760
    %v812 = vsub.f32 %v61, %v811
    %v813 = vand.u32 %v812, 4294901760
    %v814 = vsub.f32 %v812, %v813
    %v815 = vand.u32 %v814, 4294901760
    %816 = vmatpush1.msra.mxu0 %v815
    %817 = vmatprep.subr.mxu0 0.0
    %v818 = vand.u32 %v62, 4294901760
    %v819 = vsub.f32 %v62, %v818
    %v820 = vand.u32 %v819, 4294901760
    %v821 = vsub.f32 %v819, %v820
    %v822 = vand.u32 %v821, 4294901760
    %823 = vmatpush1.msra.mxu0 %v822
    %824 = vmatprep.subr.mxu0 0.0
    %v825 = vand.u32 %v63, 4294901760
    %v826 = vsub.f32 %v63, %v825
    %v827 = vand.u32 %v826, 4294901760
    %v828 = vsub.f32 %v826, %v827
    %v829 = vand.u32 %v828, 4294901760
    %830 = vmatpush1.msra.mxu0 %v829
    %831 = vmatprep.subr.mxu0 0.0
    %v832 = vand.u32 %v64, 4294901760
    %v833 = vsub.f32 %v64, %v832
    %v834 = vand.u32 %v833, 4294901760
    %v835 = vsub.f32 %v833, %v834
    %v836 = vand.u32 %v835, 4294901760
    %837 = vmatpush1.msra.mxu0 %v836
    %838 = vmatprep.subr.mxu0 0.0
    %v839 = vand.u32 %v65, 4294901760
    %v840 = vsub.f32 %v65, %v839
    %v841 = vand.u32 %v840, 4294901760
    %v842 = vsub.f32 %v840, %v841
    %v843 = vand.u32 %v842, 4294901760
    %844 = vmatpush1.msra.mxu0 %v843
    %845 = vmatprep.subr.mxu0 0.0
    %v846 = vand.u32 %v66, 4294901760
    %v847 = vsub.f32 %v66, %v846
    %v848 = vand.u32 %v847, 4294901760
    %v849 = vsub.f32 %v847, %v848
    %v850 = vand.u32 %v849, 4294901760
    %851 = vmatpush1.msra.mxu0 %v850
    %852 = vmatprep.subr.mxu0 0.0
    %v853 = vand.u32 %v67, 4294901760
    %v854 = vsub.f32 %v67, %v853
    %v855 = vand.u32 %v854, 4294901760
    %v856 = vsub.f32 %v854, %v855
    %v857 = vand.u32 %v856, 4294901760
    %858 = vmatpush1.msra.mxu0 %v857
    %859 = vmatprep.subr.mxu0 0.0
    %v860 = vand.u32 %v68, 4294901760
    %v861 = vsub.f32 %v68, %v860
    %v862 = vand.u32 %v861, 4294901760
    %v863 = vsub.f32 %v861, %v862
    %v864 = vand.u32 %v863, 4294901760
    %865 = vmatpush1.msra.mxu0 %v864
    %866 = vmatprep.subr.mxu0 0.0
    %v867 = vand.u32 %v69, 4294901760
    %v868 = vsub.f32 %v69, %v867
    %v869 = vand.u32 %v868, 4294901760
    %v870 = vsub.f32 %v868, %v869
    %v871 = vand.u32 %v870, 4294901760
    %872 = vmatpush1.msra.mxu0 %v871
    %873 = vmatprep.subr.mxu0 0.0
    %v874 = vand.u32 %v70, 4294901760
    %v875 = vsub.f32 %v70, %v874
    %v876 = vand.u32 %v875, 4294901760
    %v877 = vsub.f32 %v875, %v876
    %v878 = vand.u32 %v877, 4294901760
    %879 = vmatpush1.msra.mxu0 %v878
    %880 = vmatprep.subr.mxu0 0.0
    %v881 = vand.u32 %v71, 4294901760
    %v882 = vsub.f32 %v71, %v881
    %v883 = vand.u32 %v882, 4294901760
    %v884 = vsub.f32 %v882, %v883
    %v885 = vand.u32 %v884, 4294901760
    %886 = vmatpush1.msra.mxu0 %v885
    %887 = vmatprep.subr.mxu0 0.0
    %v888 = vand.u32 %v72, 4294901760
    %v889 = vsub.f32 %v72, %v888
    %v890 = vand.u32 %v889, 4294901760
    %v891 = vsub.f32 %v889, %v890
    %v892 = vand.u32 %v891, 4294901760
    %893 = vmatpush1.msra.mxu0 %v892
    %894 = vmatprep.subr.mxu0 0.0
    %v895 = vand.u32 %v73, 4294901760
    %v896 = vsub.f32 %v73, %v895
    %v897 = vand.u32 %v896, 4294901760
    %v898 = vsub.f32 %v896, %v897
    %v899 = vand.u32 %v898, 4294901760
    %900 = vmatpush1.msra.mxu0 %v899
    %901 = vmatprep.subr.mxu0 0.0
    %v902 = vand.u32 %v74, 4294901760
    %v903 = vsub.f32 %v74, %v902
    %v904 = vand.u32 %v903, 4294901760
    %v905 = vsub.f32 %v903, %v904
    %v906 = vand.u32 %v905, 4294901760
    %907 = vmatpush1.msra.mxu0 %v906
    %908 = vmatprep.subr.mxu0 0.0
    %v909 = vand.u32 %v75, 4294901760
    %v910 = vsub.f32 %v75, %v909
    %v911 = vand.u32 %v910, 4294901760
    %v912 = vsub.f32 %v910, %v911
    %v913 = vand.u32 %v912, 4294901760
    %914 = vmatpush1.msra.mxu0 %v913
    %915 = vmatprep.subr.mxu0 0.0
    %v916 = vand.u32 %v76, 4294901760
    %v917 = vsub.f32 %v76, %v916
    %v918 = vand.u32 %v917, 4294901760
    %v919 = vsub.f32 %v917, %v918
    %v920 = vand.u32 %v919, 4294901760
    %921 = vmatpush1.msra.mxu0 %v920
    %922 = vmatprep.subr.mxu0 0.0
    %923 = vmatpush1.msra.mxu0 0.0
    %924 = vmatprep.subr.mxu0 0.0
    %925 = vmatpush1.msra.mxu0 0.0
    %926 = vmatprep.subr.mxu0 0.0
    %927 = vmatpush1.msra.mxu0 0.0
    %928 = vmatprep.subr.mxu0 0.0
    %929 = vmatpush1.msra.mxu0 0.0
    %930 = vmatprep.subr.mxu0 0.0
    %931 = vmatpush1.msra.mxu0 0.0
    %932 = vmatprep.subr.mxu0 0.0
    %933 = vmatpush1.msra.mxu0 0.0
    %934 = vmatprep.subr.mxu0 0.0
    %935 = vmatpush1.msra.mxu0 0.0
    %936 = vmatprep.subr.mxu0 0.0
    %937 = vmatpush1.msra.mxu0 0.0
    %938 = vmatprep.subr.mxu0 0.0
    %939 = vmatpush1.msra.mxu0 0.0
    %940 = vmatprep.subr.mxu0 0.0
    %941 = vmatpush1.msra.mxu0 0.0
    %942 = vmatprep.subr.mxu0 0.0
    %943 = vmatpush1.msra.mxu0 0.0
    %944 = vmatprep.subr.mxu0 0.0
    %945 = vmatpush1.msra.mxu0 0.0
    %946 = vmatprep.subr.mxu0 0.0
    %947 = vmatpush1.msra.mxu0 0.0
    %948 = vmatprep.subr.mxu0 0.0
    %949 = vmatpush1.msra.mxu0 0.0
    %950 = vmatprep.subr.mxu0 0.0
    %951 = vmatpush1.msra.mxu0 0.0
    %952 = vmatprep.subr.mxu0 0.0
    %953 = vmatpush1.msra.mxu0 0.0
    %954 = vmatprep.mubr.f32.mxu0 0.0
    %v955 = vand.u32 %v718, 4294901760
    %956 = vmatmul.mubr.f32.gmra.mrb[0].mxu0 %v955
    %v957 = vpop.f32.mrb[0].mxu0
    %v958 = vadd.f32 %v807, %v957
    %v959 = vpop.f32.mrb[0].mxu0
    %960 = vdwg.mxu0
    %961 = vmatprep.subr.mxu0 0.0
    %v962 = vand.u32 %v61, 4294901760
    %v963 = vsub.f32 %v61, %v962
    %964 = vmatpush1.msra.mxu0 %v963
    %965 = vmatprep.subr.mxu0 0.0
    %v966 = vand.u32 %v62, 4294901760
    %v967 = vsub.f32 %v62, %v966
    %968 = vmatpush1.msra.mxu0 %v967
    %969 = vmatprep.subr.mxu0 0.0
    %v970 = vand.u32 %v63, 4294901760
    %v971 = vsub.f32 %v63, %v970
    %972 = vmatpush1.msra.mxu0 %v971
    %973 = vmatprep.subr.mxu0 0.0
    %v974 = vand.u32 %v64, 4294901760
    %v975 = vsub.f32 %v64, %v974
    %976 = vmatpush1.msra.mxu0 %v975
    %977 = vmatprep.subr.mxu0 0.0
    %v978 = vand.u32 %v65, 4294901760
    %v979 = vsub.f32 %v65, %v978
    %980 = vmatpush1.msra.mxu0 %v979
    %981 = vmatprep.subr.mxu0 0.0
    %v982 = vand.u32 %v66, 4294901760
    %v983 = vsub.f32 %v66, %v982
    %984 = vmatpush1.msra.mxu0 %v983
    %985 = vmatprep.subr.mxu0 0.0
    %v986 = vand.u32 %v67, 4294901760
    %v987 = vsub.f32 %v67, %v986
    %988 = vmatpush1.msra.mxu0 %v987
    %989 = vmatprep.subr.mxu0 0.0
    %v990 = vand.u32 %v68, 4294901760
    %v991 = vsub.f32 %v68, %v990
    %992 = vmatpush1.msra.mxu0 %v991
    %993 = vmatprep.subr.mxu0 0.0
    %v994 = vand.u32 %v69, 4294901760
    %v995 = vsub.f32 %v69, %v994
    %996 = vmatpush1.msra.mxu0 %v995
    %997 = vmatprep.subr.mxu0 0.0
    %v998 = vand.u32 %v70, 4294901760
    %v999 = vsub.f32 %v70, %v998
    %1000 = vmatpush1.msra.mxu0 %v999
    %1001 = vmatprep.subr.mxu0 0.0
    %v1002 = vand.u32 %v71, 4294901760
    %v1003 = vsub.f32 %v71, %v1002
    %1004 = vmatpush1.msra.mxu0 %v1003
    %1005 = vmatprep.subr.mxu0 0.0
    %v1006 = vand.u32 %v72, 4294901760
    %v1007 = vsub.f32 %v72, %v1006
    %1008 = vmatpush1.msra.mxu0 %v1007
    %1009 = vmatprep.subr.mxu0 0.0
    %v1010 = vand.u32 %v73, 4294901760
    %v1011 = vsub.f32 %v73, %v1010
    %1012 = vmatpush1.msra.mxu0 %v1011
    %1013 = vmatprep.subr.mxu0 0.0
    %v1014 = vand.u32 %v74, 4294901760
    %v1015 = vsub.f32 %v74, %v1014
    %1016 = vmatpush1.msra.mxu0 %v1015
    %1017 = vmatprep.subr.mxu0 0.0
    %v1018 = vand.u32 %v75, 4294901760
    %v1019 = vsub.f32 %v75, %v1018
    %1020 = vmatpush1.msra.mxu0 %v1019
    %1021 = vmatprep.subr.mxu0 0.0
    %v1022 = vand.u32 %v76, 4294901760
    %v1023 = vsub.f32 %v76, %v1022
    %1024 = vmatpush1.msra.mxu0 %v1023
    %1025 = vmatprep.subr.mxu0 0.0
    %1026 = vmatpush1.msra.mxu0 0.0
    %1027 = vmatprep.subr.mxu0 0.0
    %1028 = vmatpush1.msra.mxu0 0.0
    %1029 = vmatprep.subr.mxu0 0.0
    %1030 = vmatpush1.msra.mxu0 0.0
    %1031 = vmatprep.subr.mxu0 0.0
    %1032 = vmatpush1.msra.mxu0 0.0
    %1033 = vmatprep.subr.mxu0 0.0
    %1034 = vmatpush1.msra.mxu0 0.0
    %1035 = vmatprep.subr.mxu0 0.0
    %1036 = vmatpush1.msra.mxu0 0.0
    %1037 = vmatprep.subr.mxu0 0.0
    %1038 = vmatpush1.msra.mxu0 0.0
    %1039 = vmatprep.subr.mxu0 0.0
    %1040 = vmatpush1.msra.mxu0 0.0
    %1041 = vmatprep.subr.mxu0 0.0
    %1042 = vmatpush1.msra.mxu0 0.0
    %1043 = vmatprep.subr.mxu0 0.0
    %1044 = vmatpush1.msra.mxu0 0.0
    %1045 = vmatprep.subr.mxu0 0.0
    %1046 = vmatpush1.msra.mxu0 0.0
    %1047 = vmatprep.subr.mxu0 0.0
    %1048 = vmatpush1.msra.mxu0 0.0
    %1049 = vmatprep.subr.mxu0 0.0
    %1050 = vmatpush1.msra.mxu0 0.0
    %1051 = vmatprep.subr.mxu0 0.0
    %1052 = vmatpush1.msra.mxu0 0.0
    %1053 = vmatprep.subr.mxu0 0.0
    %1054 = vmatpush1.msra.mxu0 0.0
    %1055 = vmatprep.subr.mxu0 0.0
    %1056 = vmatpush1.msra.mxu0 0.0
    %1057 = vmatprep.mubr.f32.mxu0 0.0
    %v1058 = vand.u32 %v718, 4294901760
    %v1059 = vsub.f32 %v718, %v1058
    %1060 = vmatmul.mubr.f32.gmra.mrb[0].mxu0 %v1059
    %v1061 = vpop.f32.mrb[0].mxu0
    %v1062 = vadd.f32 %v958, %v1061
    %v1063 = vpop.f32.mrb[0].mxu0
    %1064 = vdwg.mxu0
    %1065 = vmatprep.subr.mxu0 0.0
    %v1066 = vand.u32 %v61, 4294901760
    %1067 = vmatpush1.msra.mxu0 %v1066
    %1068 = vmatprep.subr.mxu0 0.0
    %v1069 = vand.u32 %v62, 4294901760
    %1070 = vmatpush1.msra.mxu0 %v1069
    %1071 = vmatprep.subr.mxu0 0.0
    %v1072 = vand.u32 %v63, 4294901760
    %1073 = vmatpush1.msra.mxu0 %v1072
    %1074 = vmatprep.subr.mxu0 0.0
    %v1075 = vand.u32 %v64, 4294901760
    %1076 = vmatpush1.msra.mxu0 %v1075
    %1077 = vmatprep.subr.mxu0 0.0
    %v1078 = vand.u32 %v65, 4294901760
    %1079 = vmatpush1.msra.mxu0 %v1078
    %1080 = vmatprep.subr.mxu0 0.0
    %v1081 = vand.u32 %v66, 4294901760
    %1082 = vmatpush1.msra.mxu0 %v1081
    %1083 = vmatprep.subr.mxu0 0.0
    %v1084 = vand.u32 %v67, 4294901760
    %1085 = vmatpush1.msra.mxu0 %v1084
    %1086 = vmatprep.subr.mxu0 0.0
    %v1087 = vand.u32 %v68, 4294901760
    %1088 = vmatpush1.msra.mxu0 %v1087
    %1089 = vmatprep.subr.mxu0 0.0
    %v1090 = vand.u32 %v69, 4294901760
    %1091 = vmatpush1.msra.mxu0 %v1090
    %1092 = vmatprep.subr.mxu0 0.0
    %v1093 = vand.u32 %v70, 4294901760
    %1094 = vmatpush1.msra.mxu0 %v1093
    %1095 = vmatprep.subr.mxu0 0.0
    %v1096 = vand.u32 %v71, 4294901760
    %1097 = vmatpush1.msra.mxu0 %v1096
    %1098 = vmatprep.subr.mxu0 0.0
    %v1099 = vand.u32 %v72, 4294901760
    %1100 = vmatpush1.msra.mxu0 %v1099
    %1101 = vmatprep.subr.mxu0 0.0
    %v1102 = vand.u32 %v73, 4294901760
    %1103 = vmatpush1.msra.mxu0 %v1102
    %1104 = vmatprep.subr.mxu0 0.0
    %v1105 = vand.u32 %v74, 4294901760
    %1106 = vmatpush1.msra.mxu0 %v1105
    %1107 = vmatprep.subr.mxu0 0.0
    %v1108 = vand.u32 %v75, 4294901760
    %1109 = vmatpush1.msra.mxu0 %v1108
    %1110 = vmatprep.subr.mxu0 0.0
    %v1111 = vand.u32 %v76, 4294901760
    %1112 = vmatpush1.msra.mxu0 %v1111
    %1113 = vmatprep.subr.mxu0 0.0
    %1114 = vmatpush1.msra.mxu0 0.0
    %1115 = vmatprep.subr.mxu0 0.0
    %1116 = vmatpush1.msra.mxu0 0.0
    %1117 = vmatprep.subr.mxu0 0.0
    %1118 = vmatpush1.msra.mxu0 0.0
    %1119 = vmatprep.subr.mxu0 0.0
    %1120 = vmatpush1.msra.mxu0 0.0
    %1121 = vmatprep.subr.mxu0 0.0
    %1122 = vmatpush1.msra.mxu0 0.0
    %1123 = vmatprep.subr.mxu0 0.0
    %1124 = vmatpush1.msra.mxu0 0.0
    %1125 = vmatprep.subr.mxu0 0.0
    %1126 = vmatpush1.msra.mxu0 0.0
    %1127 = vmatprep.subr.mxu0 0.0
    %1128 = vmatpush1.msra.mxu0 0.0
    %1129 = vmatprep.subr.mxu0 0.0
    %1130 = vmatpush1.msra.mxu0 0.0
    %1131 = vmatprep.subr.mxu0 0.0
    %1132 = vmatpush1.msra.mxu0 0.0
    %1133 = vmatprep.subr.mxu0 0.0
    %1134 = vmatpush1.msra.mxu0 0.0
    %1135 = vmatprep.subr.mxu0 0.0
    %1136 = vmatpush1.msra.mxu0 0.0
    %1137 = vmatprep.subr.mxu0 0.0
    %1138 = vmatpush1.msra.mxu0 0.0
    %1139 = vmatprep.subr.mxu0 0.0
    %1140 = vmatpush1.msra.mxu0 0.0
    %1141 = vmatprep.subr.mxu0 0.0
    %1142 = vmatpush1.msra.mxu0 0.0
    %1143 = vmatprep.subr.mxu0 0.0
    %1144 = vmatpush1.msra.mxu0 0.0
    %1145 = vmatprep.mubr.f32.mxu0 0.0
    %v1146 = vand.u32 %v718, 4294901760
    %v1147 = vsub.f32 %v718, %v1146
    %v1148 = vand.u32 %v1147, 4294901760
    %1149 = vmatmul.mubr.f32.gmra.mrb[0].mxu0 %v1148
    %v1150 = vpop.f32.mrb[0].mxu0
    %v1151 = vadd.f32 %v1062, %v1150
    %v1152 = vpop.f32.mrb[0].mxu0
    %1153 = vdwg.mxu0
    %1154 = vmatprep.subr.mxu0 0.0
    %v1155 = vand.u32 %v61, 4294901760
    %v1156 = vsub.f32 %v61, %v1155
    %v1157 = vand.u32 %v1156, 4294901760
    %1158 = vmatpush1.msra.mxu0 %v1157
    %1159 = vmatprep.subr.mxu0 0.0
    %v1160 = vand.u32 %v62, 4294901760
    %v1161 = vsub.f32 %v62, %v1160
    %v1162 = vand.u32 %v1161, 4294901760
    %1163 = vmatpush1.msra.mxu0 %v1162
    %1164 = vmatprep.subr.mxu0 0.0
    %v1165 = vand.u32 %v63, 4294901760
    %v1166 = vsub.f32 %v63, %v1165
    %v1167 = vand.u32 %v1166, 4294901760
    %1168 = vmatpush1.msra.mxu0 %v1167
    %1169 = vmatprep.subr.mxu0 0.0
    %v1170 = vand.u32 %v64, 4294901760
    %v1171 = vsub.f32 %v64, %v1170
    %v1172 = vand.u32 %v1171, 4294901760
    %1173 = vmatpush1.msra.mxu0 %v1172
    %1174 = vmatprep.subr.mxu0 0.0
    %v1175 = vand.u32 %v65, 4294901760
    %v1176 = vsub.f32 %v65, %v1175
    %v1177 = vand.u32 %v1176, 4294901760
    %1178 = vmatpush1.msra.mxu0 %v1177
    %1179 = vmatprep.subr.mxu0 0.0
    %v1180 = vand.u32 %v66, 4294901760
    %v1181 = vsub.f32 %v66, %v1180
    %v1182 = vand.u32 %v1181, 4294901760
    %1183 = vmatpush1.msra.mxu0 %v1182
    %1184 = vmatprep.subr.mxu0 0.0
    %v1185 = vand.u32 %v67, 4294901760
    %v1186 = vsub.f32 %v67, %v1185
    %v1187 = vand.u32 %v1186, 4294901760
    %1188 = vmatpush1.msra.mxu0 %v1187
    %1189 = vmatprep.subr.mxu0 0.0
    %v1190 = vand.u32 %v68, 4294901760
    %v1191 = vsub.f32 %v68, %v1190
    %v1192 = vand.u32 %v1191, 4294901760
    %1193 = vmatpush1.msra.mxu0 %v1192
    %1194 = vmatprep.subr.mxu0 0.0
    %v1195 = vand.u32 %v69, 4294901760
    %v1196 = vsub.f32 %v69, %v1195
    %v1197 = vand.u32 %v1196, 4294901760
    %1198 = vmatpush1.msra.mxu0 %v1197
    %1199 = vmatprep.subr.mxu0 0.0
    %v1200 = vand.u32 %v70, 4294901760
    %v1201 = vsub.f32 %v70, %v1200
    %v1202 = vand.u32 %v1201, 4294901760
    %1203 = vmatpush1.msra.mxu0 %v1202
    %1204 = vmatprep.subr.mxu0 0.0
    %v1205 = vand.u32 %v71, 4294901760
    %v1206 = vsub.f32 %v71, %v1205
    %v1207 = vand.u32 %v1206, 4294901760
    %1208 = vmatpush1.msra.mxu0 %v1207
    %1209 = vmatprep.subr.mxu0 0.0
    %v1210 = vand.u32 %v72, 4294901760
    %v1211 = vsub.f32 %v72, %v1210
    %v1212 = vand.u32 %v1211, 4294901760
    %1213 = vmatpush1.msra.mxu0 %v1212
    %1214 = vmatprep.subr.mxu0 0.0
    %v1215 = vand.u32 %v73, 4294901760
    %v1216 = vsub.f32 %v73, %v1215
    %v1217 = vand.u32 %v1216, 4294901760
    %1218 = vmatpush1.msra.mxu0 %v1217
    %1219 = vmatprep.subr.mxu0 0.0
    %v1220 = vand.u32 %v74, 4294901760
    %v1221 = vsub.f32 %v74, %v1220
    %v1222 = vand.u32 %v1221, 4294901760
    %1223 = vmatpush1.msra.mxu0 %v1222
    %1224 = vmatprep.subr.mxu0 0.0
    %v1225 = vand.u32 %v75, 4294901760
    %v1226 = vsub.f32 %v75, %v1225
    %v1227 = vand.u32 %v1226, 4294901760
    %1228 = vmatpush1.msra.mxu0 %v1227
    %1229 = vmatprep.subr.mxu0 0.0
    %v1230 = vand.u32 %v76, 4294901760
    %v1231 = vsub.f32 %v76, %v1230
    %v1232 = vand.u32 %v1231, 4294901760
    %1233 = vmatpush1.msra.mxu0 %v1232
    %1234 = vmatprep.subr.mxu0 0.0
    %1235 = vmatpush1.msra.mxu0 0.0
    %1236 = vmatprep.subr.mxu0 0.0
    %1237 = vmatpush1.msra.mxu0 0.0
    %1238 = vmatprep.subr.mxu0 0.0
    %1239 = vmatpush1.msra.mxu0 0.0
    %1240 = vmatprep.subr.mxu0 0.0
    %1241 = vmatpush1.msra.mxu0 0.0
    %1242 = vmatprep.subr.mxu0 0.0
    %1243 = vmatpush1.msra.mxu0 0.0
    %1244 = vmatprep.subr.mxu0 0.0
    %1245 = vmatpush1.msra.mxu0 0.0
    %1246 = vmatprep.subr.mxu0 0.0
    %1247 = vmatpush1.msra.mxu0 0.0
    %1248 = vmatprep.subr.mxu0 0.0
    %1249 = vmatpush1.msra.mxu0 0.0
    %1250 = vmatprep.subr.mxu0 0.0
    %1251 = vmatpush1.msra.mxu0 0.0
    %1252 = vmatprep.subr.mxu0 0.0
    %1253 = vmatpush1.msra.mxu0 0.0
    %1254 = vmatprep.subr.mxu0 0.0
    %1255 = vmatpush1.msra.mxu0 0.0
    %1256 = vmatprep.subr.mxu0 0.0
    %1257 = vmatpush1.msra.mxu0 0.0
    %1258 = vmatprep.subr.mxu0 0.0
    %1259 = vmatpush1.msra.mxu0 0.0
    %1260 = vmatprep.subr.mxu0 0.0
    %1261 = vmatpush1.msra.mxu0 0.0
    %1262 = vmatprep.subr.mxu0 0.0
    %1263 = vmatpush1.msra.mxu0 0.0
    %1264 = vmatprep.subr.mxu0 0.0
    %1265 = vmatpush1.msra.mxu0 0.0
    %1266 = vmatprep.mubr.f32.mxu0 0.0
    %v1267 = vand.u32 %v718, 4294901760
    %1268 = vmatmul.mubr.f32.gmra.mrb[0].mxu0 %v1267
    %v1269 = vpop.f32.mrb[0].mxu0
    %v1270 = vadd.f32 %v1151, %v1269
    %v1271 = vpop.f32.mrb[0].mxu0
    %1272 = vdwg.mxu0
    %1273 = vmatprep.subr.mxu0 0.0
    %v1274 = vand.u32 %v61, 4294901760
    %1275 = vmatpush1.msra.mxu0 %v1274
    %1276 = vmatprep.subr.mxu0 0.0
    %v1277 = vand.u32 %v62, 4294901760
    %1278 = vmatpush1.msra.mxu0 %v1277
    %1279 = vmatprep.subr.mxu0 0.0
    %v1280 = vand.u32 %v63, 4294901760
    %1281 = vmatpush1.msra.mxu0 %v1280
    %1282 = vmatprep.subr.mxu0 0.0
    %v1283 = vand.u32 %v64, 4294901760
    %1284 = vmatpush1.msra.mxu0 %v1283
    %1285 = vmatprep.subr.mxu0 0.0
    %v1286 = vand.u32 %v65, 4294901760
    %1287 = vmatpush1.msra.mxu0 %v1286
    %1288 = vmatprep.subr.mxu0 0.0
    %v1289 = vand.u32 %v66, 4294901760
    %1290 = vmatpush1.msra.mxu0 %v1289
    %1291 = vmatprep.subr.mxu0 0.0
    %v1292 = vand.u32 %v67, 4294901760
    %1293 = vmatpush1.msra.mxu0 %v1292
    %1294 = vmatprep.subr.mxu0 0.0
    %v1295 = vand.u32 %v68, 4294901760
    %1296 = vmatpush1.msra.mxu0 %v1295
    %1297 = vmatprep.subr.mxu0 0.0
    %v1298 = vand.u32 %v69, 4294901760
    %1299 = vmatpush1.msra.mxu0 %v1298
    %1300 = vmatprep.subr.mxu0 0.0
    %v1301 = vand.u32 %v70, 4294901760
    %1302 = vmatpush1.msra.mxu0 %v1301
    %1303 = vmatprep.subr.mxu0 0.0
    %v1304 = vand.u32 %v71, 4294901760
    %1305 = vmatpush1.msra.mxu0 %v1304
    %1306 = vmatprep.subr.mxu0 0.0
    %v1307 = vand.u32 %v72, 4294901760
    %1308 = vmatpush1.msra.mxu0 %v1307
    %1309 = vmatprep.subr.mxu0 0.0
    %v1310 = vand.u32 %v73, 4294901760
    %1311 = vmatpush1.msra.mxu0 %v1310
    %1312 = vmatprep.subr.mxu0 0.0
    %v1313 = vand.u32 %v74, 4294901760
    %1314 = vmatpush1.msra.mxu0 %v1313
    %1315 = vmatprep.subr.mxu0 0.0
    %v1316 = vand.u32 %v75, 4294901760
    %1317 = vmatpush1.msra.mxu0 %v1316
    %1318 = vmatprep.subr.mxu0 0.0
    %v1319 = vand.u32 %v76, 4294901760
    %1320 = vmatpush1.msra.mxu0 %v1319
    %1321 = vmatprep.subr.mxu0 0.0
    %1322 = vmatpush1.msra.mxu0 0.0
    %1323 = vmatprep.subr.mxu0 0.0
    %1324 = vmatpush1.msra.mxu0 0.0
    %1325 = vmatprep.subr.mxu0 0.0
    %1326 = vmatpush1.msra.mxu0 0.0
    %1327 = vmatprep.subr.mxu0 0.0
    %1328 = vmatpush1.msra.mxu0 0.0
    %1329 = vmatprep.subr.mxu0 0.0
    %1330 = vmatpush1.msra.mxu0 0.0
    %1331 = vmatprep.subr.mxu0 0.0
    %1332 = vmatpush1.msra.mxu0 0.0
    %1333 = vmatprep.subr.mxu0 0.0
    %1334 = vmatpush1.msra.mxu0 0.0
    %1335 = vmatprep.subr.mxu0 0.0
    %1336 = vmatpush1.msra.mxu0 0.0
    %1337 = vmatprep.subr.mxu0 0.0
    %1338 = vmatpush1.msra.mxu0 0.0
    %1339 = vmatprep.subr.mxu0 0.0
    %1340 = vmatpush1.msra.mxu0 0.0
    %1341 = vmatprep.subr.mxu0 0.0
    %1342 = vmatpush1.msra.mxu0 0.0
    %1343 = vmatprep.subr.mxu0 0.0
    %1344 = vmatpush1.msra.mxu0 0.0
    %1345 = vmatprep.subr.mxu0 0.0
    %1346 = vmatpush1.msra.mxu0 0.0
    %1347 = vmatprep.subr.mxu0 0.0
    %1348 = vmatpush1.msra.mxu0 0.0
    %1349 = vmatprep.subr.mxu0 0.0
    %1350 = vmatpush1.msra.mxu0 0.0
    %1351 = vmatprep.subr.mxu0 0.0
    %1352 = vmatpush1.msra.mxu0 0.0
    %1353 = vmatprep.mubr.f32.mxu0 0.0
    %v1354 = vand.u32 %v718, 4294901760
    %1355 = vmatmul.mubr.f32.gmra.mrb[0].mxu0 %v1354
    %v1356 = vpop.f32.mrb[0].mxu0
    %v1357 = vadd.f32 %v1270, %v1356
    %v1358 = vpop.f32.mrb[0].mxu0
    %1359 = vdwg.mxu0
    %v1360 = vmul.f32 %v715, %v715
    %v1361 = vsub.f32 %v1357, %v1360
    %v1362 = vmax.f32 %v1361, 0.0
    %v1363 = vadd.f32 %v1362, 1e-05
    %v1364 = vrsqrt.pop %v1363
    %v1365 = vsub.f32 %v60, %v715
    %v1366 = vld [vmem:[%s2] sm:$0x1]
    %v1368 = vlaneseq
    %v1369 = vshrl.u32 %v1368, 7
    %v1370 = vsub.s32 0, %v1369
    %v1371 = vrot.slane %v1366, %v1370
    %v1373 = vmul.f32 %v1364, %v1371
    %v1374 = vmul.f32 %v1365, %v1373
    %v1375 = vld [vmem:[%s3] sm:$0x1]
    %v1377 = vlaneseq
    %v1378 = vshrl.u32 %v1377, 7
    %v1379 = vsub.s32 0, %v1378
    %v1380 = vrot.slane %v1375, %v1379
    %v1382 = vadd.f32 %v1374, %v1380
    %1383 = vst [vmem:[#allocation8] sm:$0xf] %v1382
    // Predicated region
    $region34: #{tpu_custom_call.1} parent=1 // pred_check
      _
    $region35: #{tpu_custom_call.1} parent=1 // pred_check_branch
      %1385 = sbr.rel (0) target = $region37
    $region36: #{tpu_custom_call.1} parent=1 // pred_region
      %s1387 = ssub.s32 64, 64
      %1388 = vsyncadd [#allocation4], %s1387
      %s1390 = sshll.u32 [#allocation8], 4
      %s1391 = int_to_ptr.vmem [resolvable:$true] %s1390
      %1393 = dma.vmem_to_hbm [thread:$0]  %s1391, 64, %s5, [#allocation4]
    $region37: #{tpu_custom_call.1} parent=1 // pred_fallthru
      _
    // Predicated region
    $region38: #{tpu_custom_call.1} parent=1 // pred_check
      _
    $region39: #{tpu_custom_call.1} parent=1 // pred_check_branch
      %1395 = sbr.rel (0) target = $region41
    $region40: #{tpu_custom_call.1} parent=1 // pred_region
      %1396 = dma.done [#allocation4], 64
    $region41: #{tpu_custom_call.1} parent=1 // pred_fallthru
      _
    %1397 = vsyncpa [#allocation3], 1
    %1398 = vsyncpa [#allocation6], 1
    %1399 = vsyncpa [#allocation4], 1

</llo_original>
